<compile_context>
chip_gen: v5e
topology: v5e:2x2
jax: 0.10.0
libtpu: 0.0.40
codegen_flags: <defaults>
</compile_context>

<pallas_src>
import jax
import jax.numpy as jnp
from jax.experimental import pallas as pl
from jax.experimental.pallas import tpu as pltpu

_LANES = 128
_SUBLANES = 8


def _round_up(x, m):
    return ((x + m - 1) // m) * m


def _chroma_classifier_kernel(z_ref, w_ref, b_ref, o_ref):
    z = z_ref[...]                      # (TB, In)
    w = w_ref[...]                      # (In, 128)   padded cols are 0
    b = b_ref[...]                      # (1, 128)    padded entries are -1e30

    # Linear: z @ W + b  (MXU matmul, f32 accumulation).
    logits = jnp.dot(z, w, preferred_element_type=jnp.float32) + b  # (TB, 128)

    # Numerically stable softmax over the last axis. Padded columns have
    # logit ~ -1e30, so exp underflows to exactly 0 and the denominator is the
    # sum over the real classes only.
    m = jnp.max(logits, axis=-1, keepdims=True)
    e = jnp.exp(logits - m)
    denom = jnp.sum(e, axis=-1, keepdims=True)

    # Approximate reciprocal on the EUP slot + one Newton refinement step
    # (cheap VPU multiplies) -> ~full f32 precision without an exact divide.
    r = pl.reciprocal(denom, approx=True)
    r = r * (2.0 - denom * r)

    o_ref[...] = (e * r).astype(o_ref.dtype)


def chroma_classifier(z, w, b, *, batch_tile=4096):
    """z: (B, input_dim), w: (input_dim, out_dim), b: (out_dim,)."""
    B, in_dim = z.shape
    out_dim = w.shape[1]
    out_pad = _round_up(max(out_dim, _LANES), _LANES)  # lane-dense output width

    # Pad the classifier head once in the wrapper:
    #   weight padded columns -> 0, bias padded entries -> -1e30
    # so padded logits vanish after exp (softmax unchanged, no kernel masking).
    w_p = jnp.zeros((in_dim, out_pad), jnp.float32).at[:, :out_dim].set(
        w.astype(jnp.float32))
    b_p = jnp.full((1, out_pad), -1e30, jnp.float32).at[0, :out_dim].set(
        b.astype(jnp.float32))

    if B <= batch_tile:
        # -------- Small-batch path: no grid, no pipelining, everything in VMEM.
        B_pad = _round_up(B, _SUBLANES)
        z_p = z if B_pad == B else jnp.pad(z, ((0, B_pad - B), (0, 0)))
        out = pl.pallas_call(
            _chroma_classifier_kernel,
            out_shape=jax.ShapeDtypeStruct((B_pad, out_pad), jnp.float32),
            in_specs=[
                pl.BlockSpec(memory_space=pltpu.MemorySpace.VMEM),
                pl.BlockSpec(memory_space=pltpu.MemorySpace.VMEM),
                pl.BlockSpec(memory_space=pltpu.MemorySpace.VMEM),
            ],
            out_specs=pl.BlockSpec(memory_space=pltpu.MemorySpace.VMEM),
        )(z_p, w_p, b_p)
    else:
        # -------- Large-batch path: tile only the batch axis, weights resident.
        tb = batch_tile
        B_pad = _round_up(B, tb)
        z_p = z if B_pad == B else jnp.pad(z, ((0, B_pad - B), (0, 0)))
        out = pl.pallas_call(
            _chroma_classifier_kernel,
            out_shape=jax.ShapeDtypeStruct((B_pad, out_pad), jnp.float32),
            grid=(B_pad // tb,),
            in_specs=[
                pl.BlockSpec((tb, in_dim), lambda i: (i, 0)),
                pl.BlockSpec((in_dim, out_pad), lambda i: (0, 0)),  # resident
                pl.BlockSpec((1, out_pad), lambda i: (0, 0)),       # resident
            ],
            out_specs=pl.BlockSpec((tb, out_pad), lambda i: (i, 0)),
            compiler_params=pltpu.CompilerParams(
                dimension_semantics=("parallel",)),
        )(z_p, w_p, b_p)

    return out[:B, :out_dim]


def reference(z, w, b):
    logits = z @ w + b
    m = jnp.max(logits, axis=-1, keepdims=True)
    e = jnp.exp(logits - m)
    return e / jnp.sum(e, axis=-1, keepdims=True)


if __name__ == "__main__":
    input_dim, out_dim, batch = 20, 14, 8

    key = jax.random.PRNGKey(0)
    k_z, k_w, k_b = jax.random.split(key, 3)

    # Deterministic synthetic parameters (shapes match nn.Linear(20, 14)).
    z = jax.random.normal(k_z, (batch, input_dim), dtype=jnp.float32)
    w = jax.random.normal(k_w, (input_dim, out_dim), dtype=jnp.float32) * 0.2
    b = jax.random.normal(k_b, (out_dim,), dtype=jnp.float32) * 0.1

    # Small-batch (no-grid) path.
    out = jax.block_until_ready(chroma_classifier(z, w, b))
    ref = reference(z, w, b)
    assert out.shape == (batch, out_dim)
    assert jnp.allclose(out, ref, atol=1e-5, rtol=1e-5), "mismatch vs reference"
    assert jnp.allclose(jnp.sum(out, axis=-1), 1.0, atol=1e-5), \
        "softmax rows must sum to 1"

    # Exercise the batch-tiled (gridded, 'parallel') path with a non-divisible B.
    z_big = jax.random.normal(k_z, (100, input_dim), dtype=jnp.float32)
    out_big = jax.block_until_ready(chroma_classifier(z_big, w, b, batch_tile=32))
    ref_big = reference(z_big, w, b)
    assert out_big.shape == (100, out_dim)
    assert jnp.allclose(out_big, ref_big, atol=1e-5, rtol=1e-5), \
        "mismatch vs reference (tiled path)"
    assert jnp.allclose(jnp.sum(out_big, axis=-1), 1.0, atol=1e-5), \
        "softmax rows must sum to 1 (tiled path)"

    print("KERNEL_OK")
</pallas_src>

<mosaic_0001>
module attributes {stable_mosaic.version = 11 : i64} {
  func.func @_chroma_classifier_kernel(%arg0: memref<8x20xf32, #tpu.memory_space<vmem>>, %arg1: memref<20x128xf32, #tpu.memory_space<vmem>>, %arg2: memref<1x128xf32, #tpu.memory_space<vmem>>, %arg3: memref<8x128xf32, #tpu.memory_space<vmem>>) attributes {dimension_semantics = [], scalar_prefetch = 0 : i64, scratch_operands = 0 : i64, tpu.core_type = #tpu.core_type<tc>} {
    %c0 = arith.constant 0 : index
    %c0_0 = arith.constant 0 : index
    %0 = vector.load %arg0[%c0, %c0_0] : memref<8x20xf32, #tpu.memory_space<vmem>>, vector<8x20xf32>
    %c0_1 = arith.constant 0 : index
    %c0_2 = arith.constant 0 : index
    %1 = vector.load %arg1[%c0_1, %c0_2] : memref<20x128xf32, #tpu.memory_space<vmem>>, vector<20x128xf32>
    %c0_3 = arith.constant 0 : index
    %c0_4 = arith.constant 0 : index
    %2 = vector.load %arg2[%c0_3, %c0_4] : memref<1x128xf32, #tpu.memory_space<vmem>>, vector<1x128xf32>
    %cst = arith.constant dense<0.000000e+00> : vector<8x128xf32>
    %3 = tpu.matmul %0, %1, %cst {dimension_numbers = #tpu.dot_dimension_numbers<[1], [0], [0], [1], [0, 0, 1, 1], [], []>} : vector<8x20xf32>, vector<20x128xf32>, vector<8x128xf32> -> vector<8x128xf32>
    %4 = vector.broadcast %2 : vector<1x128xf32> to vector<8x128xf32>
    %5 = arith.addf %3, %4 : vector<8x128xf32>
    %cst_5 = arith.constant dense<0xFF800000> : vector<8xf32>
    %6 = vector.multi_reduction <maximumf>, %5, %cst_5 [1] : vector<8x128xf32> to vector<8xf32>
    %7 = vector.shape_cast %6 : vector<8xf32> to vector<8x1xf32>
    %8 = vector.broadcast %7 : vector<8x1xf32> to vector<8x128xf32>
    %9 = arith.subf %5, %8 : vector<8x128xf32>
    %10 = math.exp %9 : vector<8x128xf32>
    %cst_6 = arith.constant dense<0.000000e+00> : vector<8xf32>
    %11 = vector.multi_reduction <add>, %10, %cst_6 [1] : vector<8x128xf32> to vector<8xf32>
    %12 = vector.shape_cast %11 : vector<8xf32> to vector<8x1xf32>
    %13 = tpu.reciprocal %12 {approx = true} : vector<8x1xf32> -> vector<8x1xf32>
    %14 = arith.mulf %12, %13 : vector<8x1xf32>
    %cst_7 = arith.constant 2.000000e+00 : f32
    %15 = vector.broadcast %cst_7 : f32 to vector<8x1xf32>
    %16 = arith.subf %15, %14 : vector<8x1xf32>
    %17 = arith.mulf %13, %16 : vector<8x1xf32>
    %18 = vector.broadcast %17 : vector<8x1xf32> to vector<8x128xf32>
    %19 = arith.mulf %10, %18 : vector<8x128xf32>
    %c0_8 = arith.constant 0 : index
    %c0_9 = arith.constant 0 : index
    %20 = vector.load %arg3[%c0_8, %c0_9] : memref<8x128xf32, #tpu.memory_space<vmem>>, vector<8x128xf32>
    tpu.vector_store %arg3[%c0_8, %c0_9], %19 {strides = array<i32>} : memref<8x128xf32, #tpu.memory_space<vmem>>, vector<8x128xf32>,
    return
  }
}

</mosaic_0001>

<llo_original>
// kernel: tpu_custom_call.1
$region0: #{tpu_custom_call.1}
  #allocation0 [shape = 'u32[]', space=smem, size = 0x4, offset = 0x4, fixed_abs, tag = 'smem constant byte address 0x4 - core index']
  #allocation1 [shape = 'u32[72,128]{1,0:T(1,128)}', space=vmem, size = 0x9000, scoped, tag = 'internal scratch']
  %s0 = inlined_call_operand.hbm [shape: f32[8,20], index: 0, kind: input, shape index: {}]
  %s1 = inlined_call_operand.hbm [shape: f32[20,128], index: 1, kind: input, shape index: {}]
  %s2 = inlined_call_operand.vmem [shape: f32[1,128], index: 2, kind: input, shape index: {}]
  %s3 = inlined_call_operand.hbm [shape: f32[8,128], index: 3, kind: output, shape index: {}]
  %s4 = sld [smem:[#allocation0]]
  $region30: #{tpu_custom_call.1} parent=0
    _
  %s6 = ssub.s32 1, %s4
  %s7 = scalar_select 0, %s6, %s4
  $region1: #{tpu_custom_call.1} parent=0
    #allocation2 [shape = 'u8[4096]{0}', space=vmem, size = 0x1000, scoped, tag = 'input window, operand 0, single buffered']
    #allocation3 [shape = 's32[1]{0}', space=sflag, size = 0x4, scoped, tag = 'scoped memory for tpu_custom_call.1']
    #allocation4 [shape = 's32[1]{0}', space=sflag, size = 0x4, scoped, tag = 'scoped memory for tpu_custom_call.1']
    #allocation5 [shape = 'u8[12288]{0}', space=vmem, size = 0x3000, scoped, tag = 'input window, operand 1, single buffered']
    #allocation6 [shape = 's32[1]{0}', space=sflag, size = 0x4, scoped, tag = 'scoped memory for tpu_custom_call.1']
    #allocation7 [shape = 'u8[4096]{0}', space=vmem, size = 0x1000, scoped, tag = 'output window, operand 0, single buffered']
    %8 = vsyncpa [#allocation3], 0
    %9 = vsyncpa [#allocation6], 0
    %10 = vsyncpa [#allocation4], 0
    // Predicated region
    $region2: #{tpu_custom_call.1} parent=1 // pred_check
      _
    $region3: #{tpu_custom_call.1} parent=1 // pred_check_branch
      %12 = sbr.rel (0) target = $region5
    $region4: #{tpu_custom_call.1} parent=1 // pred_region
      %14 = vsyncadd [#allocation3], 0
      %s16 = sshll.u32 %s0, 4
      %s17 = int_to_ptr.hbm [resolvable:$true] %s16
      %s18 = sshll.u32 [#allocation2], 4
      %s19 = int_to_ptr.vmem [resolvable:$true] %s18
      %21 = dma.hbm_to_vmem [thread:$0]  %s17, 128, %s19, [#allocation3]
    $region5: #{tpu_custom_call.1} parent=1 // pred_fallthru
      _
    // Predicated region
    $region6: #{tpu_custom_call.1} parent=1 // pred_check
      _
    $region7: #{tpu_custom_call.1} parent=1 // pred_check_branch
      %23 = sbr.rel (0) target = $region9
    $region8: #{tpu_custom_call.1} parent=1 // pred_region
      %25 = vsyncadd [#allocation6], 0
      %s26 = sshll.u32 %s1, 4
      %s27 = int_to_ptr.hbm [resolvable:$true] %s26
      %s28 = sshll.u32 [#allocation5], 4
      %s29 = int_to_ptr.vmem [resolvable:$true] %s28
      %34 = dma.hbm_to_vmem [thread:$0]  %s27, 384, %s29, [#allocation6], 128, 128, 8
    $region9: #{tpu_custom_call.1} parent=1 // pred_fallthru
      _
    // Predicated region
    $region10: #{tpu_custom_call.1} parent=1 // pred_check
      _
    $region11: #{tpu_custom_call.1} parent=1 // pred_check_branch
      %36 = sbr.rel (0) target = $region13
    $region12: #{tpu_custom_call.1} parent=1 // pred_region
      _
    $region13: #{tpu_custom_call.1} parent=1 // pred_fallthru
      _
    // Predicated region
    $region14: #{tpu_custom_call.1} parent=1 // pred_check
      _
    $region15: #{tpu_custom_call.1} parent=1 // pred_check_branch
      %38 = sbr.rel (0) target = $region17
    $region16: #{tpu_custom_call.1} parent=1 // pred_region
      %40 = dma.done [#allocation3], 128
    $region17: #{tpu_custom_call.1} parent=1 // pred_fallthru
      _
    // Predicated region
    $region18: #{tpu_custom_call.1} parent=1 // pred_check
      _
    $region19: #{tpu_custom_call.1} parent=1 // pred_check_branch
      %42 = sbr.rel (0) target = $region21
    $region20: #{tpu_custom_call.1} parent=1 // pred_region
      %44 = dma.done [#allocation6], 384
    $region21: #{tpu_custom_call.1} parent=1 // pred_fallthru
      _
    %v45 = vld [vmem:[#allocation2] sm:$0xff]
    %v46 = vld [vmem:[#allocation5] sm:$0xff]
    %v47 = vld [vmem:[#allocation5 + $0x8] sm:$0xff]
    %v48 = vld [vmem:[#allocation5 + $0x10] sm:$0xf]
    %v49 = vld [vmem:[%s2] sm:$0x1]
    %v51 = vperm.slane %v49, 0
    %vm53 = vcmask 162816
    %v55 = vsel %vm53, %v45, 0
    %vm57 = vcmask 1043456
    %v59 = vsel %vm57, %v48, 0
    %61 = vmatpush.msra.mxu0 0.0
    %62 = vmatpush.msra.mxu0 0.0
    %63 = vmatpush.msra.mxu0 0.0
    %64 = vmatpush.msra.mxu0 0.0
    %65 = vmatpush.msra.mxu0 0.0
    %66 = vmatpush.msra.mxu0 0.0
    %67 = vmatpush.msra.mxu0 0.0
    %68 = vmatpush.msra.mxu0 0.0
    %69 = vmatpush.msra.mxu0 0.0
    %70 = vmatpush.msra.mxu0 0.0
    %71 = vmatpush.msra.mxu0 0.0
    %72 = vmatpush.msra.mxu0 0.0
    %73 = vmatpush.msra.mxu0 0.0
    %74 = vmatpush.msra.mxu0 %v59
    %75 = vmatpush.msra.mxu0 %v47
    %76 = vmatpush.msra.mxu0 %v46
    %77 = vmatmul.f32.gmra.mxu0 %v55
    %v78 = vpop.f32.mrf.mxu0
    %v79 = vadd.f32 %v51, %v78
    %80 = vdwg.mxu0
    %81 = vmax.xlane.f32.xlu0 %v79
    %v82 = vpop.xlane.xlu0 %81
    %v83 = vsub.f32 %v79, %v82
    %v84 = vmul.f32 %v83, 1.442695
    %v85 = vpow.pop %v84
    %86 = vadd.xlane.f32.xlu0 %v85
    %v87 = vpop.xlane.xlu0 %86
    %v88 = vrcp.pop %v87
    %v89 = vmul.f32 %v87, %v88
    %v90 = vsub.f32 2.0, %v89
    %v91 = vmul.f32 %v88, %v90
    %v92 = vmul.f32 %v85, %v91
    %93 = vst [vmem:[#allocation7] sm:$0xff] %v92
    // Predicated region
    $region22: #{tpu_custom_call.1} parent=1 // pred_check
      _
    $region23: #{tpu_custom_call.1} parent=1 // pred_check_branch
      %95 = sbr.rel (0) target = $region25
    $region24: #{tpu_custom_call.1} parent=1 // pred_region
      %97 = vsyncadd [#allocation4], 0
      %s99 = sshll.u32 [#allocation7], 4
      %s100 = int_to_ptr.vmem [resolvable:$true] %s99
      %s101 = sshll.u32 %s3, 4
      %s102 = int_to_ptr.hbm [resolvable:$true] %s101
      %104 = dma.vmem_to_hbm [thread:$0]  %s100, 128, %s102, [#allocation4]
    $region25: #{tpu_custom_call.1} parent=1 // pred_fallthru
      _
    // Predicated region
    $region26: #{tpu_custom_call.1} parent=1 // pred_check
      _
    $region27: #{tpu_custom_call.1} parent=1 // pred_check_branch
      %106 = sbr.rel (0) target = $region29
    $region28: #{tpu_custom_call.1} parent=1 // pred_region
      %108 = dma.done [#allocation4], 128
    $region29: #{tpu_custom_call.1} parent=1 // pred_fallthru
      _
    %109 = vsyncpa [#allocation3], 1
    %110 = vsyncpa [#allocation6], 1
    %111 = vsyncpa [#allocation4], 1

</llo_original>
